<compile_context>
chip_gen: v5e
topology: v5e:2x2
jax: 0.10.0
libtpu: 0.0.40
codegen_flags: <defaults>
</compile_context>

<pallas_src>
import functools

import jax
import jax.numpy as jnp
import numpy as np
from jax.experimental import pallas as pl
from jax.experimental.pallas import tpu as pltpu

NPAD = 128   # padded node count & feature width (lane / MXU friendly)
SROWS = 8    # sublane-padded row count of the tiny (8, 128) score output slab


def _gcn_kernel(prob, seed_ref, a_ref, x_ref, w1_ref, b1_ref, w2_ref, b2_ref,
                w3_ref, b3_ref, s_ref):
    a = a_ref[...]                                        # bf16 (NPAD, NPAD)

    # conv1: relu( A_hat @ (X @ W1) + b1 )  (PyG GCNConv: lin -> propagate -> +bias)
    h = jnp.dot(x_ref[...], w1_ref[...], preferred_element_type=jnp.float32)
    h = jnp.dot(a, h.astype(jnp.bfloat16),
                preferred_element_type=jnp.float32) + b1_ref[...]
    h = jnp.maximum(h, 0.0)

    # conv2: relu( A_hat @ (H @ W2) + b2 )
    h = jnp.dot(h.astype(jnp.bfloat16), w2_ref[...],
                preferred_element_type=jnp.float32)
    h = jnp.dot(a, h.astype(jnp.bfloat16),
                preferred_element_type=jnp.float32) + b2_ref[...]
    h = jnp.maximum(h, 0.0)

    # F.dropout(x, p=prob) (functional default: training=True).  prob is static;
    # the 1/(1-prob) keep-scale is pre-folded into W3, so only the mask remains.
    if prob > 0.0:
        # TODO(synk): torch's RNG stream can't be reproduced; uses the TPU hw PRNG.
        pltpu.prng_seed(seed_ref[0])
        bits = pltpu.bitcast(pltpu.prng_random_bits(h.shape), jnp.uint32)
        thresh = min(int(prob * (1 << 32)), (1 << 32) - 1)  # keep iff bits >= thresh
        h = jnp.where(bits >= jnp.uint32(thresh), h, 0.0)

    # fully_con1: s = H @ W3 + b3.  Only column 0 of the padded result is real;
    # transpose (XLU vxpose, free slot) so the node scores land lane-dense in
    # row 0 and only an (8, 128) f32 slab is written back (16x less output DMA).
    s_full = jnp.dot(h.astype(jnp.bfloat16), w3_ref[...],
                     preferred_element_type=jnp.float32) + b3_ref[...]
    s_ref[...] = s_full.T[:SROWS, :]


def _pad2(m):
    z = jnp.zeros((NPAD, NPAD), jnp.float32).at[:m.shape[0], :m.shape[1]].set(m)
    return z.astype(jnp.bfloat16)


def _padrow(v):  # biases stay f32 (added to the f32 accumulator)
    return jnp.zeros((1, NPAD), jnp.float32).at[0, :v.shape[0]].set(v)


def prepare_params(params, prob=0.0):
    """One-time padding/casting of GCN weights to MXU-ready (128,128) bf16 slabs.

    Hoisted out of the per-call path.  The static dropout keep-scale 1/(1-prob)
    is folded into W3 here (dropout commutes with the final linear layer).
    """
    w1, b1, w2, b2, w3, b3 = params
    w3 = w3 * (1.0 / (1.0 - prob)) if prob > 0.0 else w3
    return (_pad2(w1), _padrow(b1), _pad2(w2), _padrow(b2), _pad2(w3), _padrow(b3))


@functools.partial(jax.jit, static_argnames=("prob",))
def gcn_forward(x, edge_index, padded_params, seed, prob=0.0):
    """x: (N, 2) f32, edge_index: (2, E) i32 -> ((E,) edge scores, (N, N) A_hat)."""
    n = x.shape[0]
    src, dst = edge_index[0], edge_index[1]

    # ---- gcn_norm, improved=True, edge_weight=None -> ones.
    # add_remaining_self_loops semantics: existing self-loops keep weight 1.0,
    # only missing self-loops are added with weight 2.0 (no double counting). ----
    is_loop = (src == dst)
    ew = jnp.where(is_loop, 0.0, 1.0).astype(jnp.float32)   # original non-loop edges
    loop_cnt = jnp.zeros((n,), jnp.float32).at[src].add(is_loop.astype(jnp.float32))
    loop_w = jnp.where(loop_cnt > 0, 1.0, 2.0)
    loop = jnp.arange(n)
    row = jnp.concatenate([src, loop])                       # message sources
    col = jnp.concatenate([dst, loop])                       # aggregation targets
    w = jnp.concatenate([ew, loop_w])
    deg = jnp.zeros((n,), jnp.float32).at[col].add(w)
    dinv = jnp.where(deg > 0, jax.lax.rsqrt(deg), 0.0)
    norm = dinv[row] * w * dinv[col]
    a_hat = jnp.zeros((n, n), jnp.float32).at[col, row].add(norm)

    w1p, b1p, w2p, b2p, w3p, b3p = padded_params
    args = (
        jnp.asarray(seed, jnp.int32).reshape(1),
        _pad2(a_hat), _pad2(x),            # per-graph operands (padded per call)
        w1p, b1p, w2p, b2p, w3p, b3p,      # pre-padded bf16 parameter slabs
    )

    vmem = pl.BlockSpec(memory_space=pltpu.MemorySpace.VMEM)
    smem = pl.BlockSpec(memory_space=pltpu.MemorySpace.SMEM)
    s_pad = pl.pallas_call(
        functools.partial(_gcn_kernel, float(prob)),
        out_shape=jax.ShapeDtypeStruct((SROWS, NPAD), jnp.float32),
        in_specs=[smem] + [vmem] * 8,      # 9 specs for 9 inputs
        out_specs=vmem,
        compiler_params=pltpu.CompilerParams(vmem_limit_bytes=4 * 1024 * 1024),
        cost_estimate=pl.CostEstimate(
            flops=5 * 2 * NPAD ** 3,
            transcendentals=0,
            bytes_accessed=5 * NPAD * NPAD * 2 + 3 * NPAD * 4 + SROWS * NPAD * 4),
    )(*args)

    # Edge scores (s[src] * s[dst]).sum(-1); the Linear output is 1-dim, so this
    # is a per-node scalar gather from the lane-dense row 0 of the tiny slab.
    s_nodes = s_pad[0, :n]
    return s_nodes[src] * s_nodes[dst], a_hat


if __name__ == "__main__":
    key = jax.random.PRNGKey(0)
    k_x, k_e, k1, k2, k3, kb3 = jax.random.split(key, 6)

    N, E = 16, 24
    x = jax.random.normal(k_x, (N, 2), jnp.float32)
    edge_index = jax.random.randint(k_e, (2, E), 0, N, jnp.int32)
    prob = 0.0  # dropout prob (identity at 0.0 -> deterministic example)

    # Deterministic parameter init (shapes from GCN.__init__):
    # GCNConv(2,16): weight (2,16), bias (16); GCNConv(16,16); Linear(16,1)
    w1 = jax.random.normal(k1, (2, 16), jnp.float32) * 0.3
    b1 = jnp.zeros((16,), jnp.float32)
    w2 = jax.random.normal(k2, (16, 16), jnp.float32) * 0.2
    b2 = jnp.zeros((16,), jnp.float32)
    w3 = jax.random.normal(k3, (16, 1), jnp.float32) * 0.2
    b3 = jax.random.normal(kb3, (1,), jnp.float32) * 0.1
    params = (w1, b1, w2, b2, w3, b3)

    # One-time parameter prep (padding + bf16 cast + dropout-scale fold), hoisted
    # out of the per-call hot path.
    padded_params = prepare_params(params, prob=prob)

    out, a_hat = gcn_forward(x, edge_index, padded_params, 0, prob=prob)
    out = jax.block_until_ready(out)

    # Pure-JAX f32 reference of the same math (prob=0.0 -> dropout is identity).
    h = jnp.maximum(a_hat @ (x @ w1) + b1, 0.0)
    h = jnp.maximum(a_hat @ (h @ w2) + b2, 0.0)
    s = h @ w3 + b3
    ref = (s[edge_index[0]] * s[edge_index[1]]).sum(axis=-1)
    # bf16 MXU operands -> loosened tolerance vs. the f32 reference.
    assert np.allclose(np.asarray(out), np.asarray(ref), rtol=5e-2, atol=5e-2), (out, ref)

    print("KERNEL_OK")
</pallas_src>

<mosaic_0001>
module attributes {stable_mosaic.version = 11 : i64} {
  func.func @_gcn_kernel(%arg0: memref<1xi32, #tpu.memory_space<smem>>, %arg1: memref<128x128xbf16, #tpu.memory_space<vmem>>, %arg2: memref<128x128xbf16, #tpu.memory_space<vmem>>, %arg3: memref<128x128xbf16, #tpu.memory_space<vmem>>, %arg4: memref<1x128xf32, #tpu.memory_space<vmem>>, %arg5: memref<128x128xbf16, #tpu.memory_space<vmem>>, %arg6: memref<1x128xf32, #tpu.memory_space<vmem>>, %arg7: memref<128x128xbf16, #tpu.memory_space<vmem>>, %arg8: memref<1x128xf32, #tpu.memory_space<vmem>>, %arg9: memref<8x128xf32, #tpu.memory_space<vmem>>) attributes {dimension_semantics = [], scalar_prefetch = 0 : i64, scratch_operands = 0 : i64, tpu.core_type = #tpu.core_type<tc>} {
    %c0 = arith.constant 0 : index
    %c0_0 = arith.constant 0 : index
    %0 = vector.load %arg1[%c0, %c0_0] : memref<128x128xbf16, #tpu.memory_space<vmem>>, vector<128x128xbf16>
    %c0_1 = arith.constant 0 : index
    %c0_2 = arith.constant 0 : index
    %1 = vector.load %arg2[%c0_1, %c0_2] : memref<128x128xbf16, #tpu.memory_space<vmem>>, vector<128x128xbf16>
    %c0_3 = arith.constant 0 : index
    %c0_4 = arith.constant 0 : index
    %2 = vector.load %arg3[%c0_3, %c0_4] : memref<128x128xbf16, #tpu.memory_space<vmem>>, vector<128x128xbf16>
    %cst = arith.constant dense<0.000000e+00> : vector<128x128xf32>
    %3 = tpu.matmul %1, %2, %cst {dimension_numbers = #tpu.dot_dimension_numbers<[1], [0], [0], [1], [0, 0, 1, 1], [], []>} : vector<128x128xbf16>, vector<128x128xbf16>, vector<128x128xf32> -> vector<128x128xf32>
    %4 = arith.truncf %3 : vector<128x128xf32> to vector<128x128xbf16>
    %cst_5 = arith.constant dense<0.000000e+00> : vector<128x128xf32>
    %5 = tpu.matmul %0, %4, %cst_5 {dimension_numbers = #tpu.dot_dimension_numbers<[1], [0], [0], [1], [0, 0, 1, 1], [], []>} : vector<128x128xbf16>, vector<128x128xbf16>, vector<128x128xf32> -> vector<128x128xf32>
    %c0_6 = arith.constant 0 : index
    %c0_7 = arith.constant 0 : index
    %6 = vector.load %arg4[%c0_6, %c0_7] : memref<1x128xf32, #tpu.memory_space<vmem>>, vector<1x128xf32>
    %7 = vector.broadcast %6 : vector<1x128xf32> to vector<128x128xf32>
    %8 = arith.addf %5, %7 : vector<128x128xf32>
    %cst_8 = arith.constant 0.000000e+00 : f32
    %9 = vector.broadcast %cst_8 : f32 to vector<128x128xf32>
    %10 = arith.maximumf %8, %9 : vector<128x128xf32>
    %11 = arith.truncf %10 : vector<128x128xf32> to vector<128x128xbf16>
    %c0_9 = arith.constant 0 : index
    %c0_10 = arith.constant 0 : index
    %12 = vector.load %arg5[%c0_9, %c0_10] : memref<128x128xbf16, #tpu.memory_space<vmem>>, vector<128x128xbf16>
    %cst_11 = arith.constant dense<0.000000e+00> : vector<128x128xf32>
    %13 = tpu.matmul %11, %12, %cst_11 {dimension_numbers = #tpu.dot_dimension_numbers<[1], [0], [0], [1], [0, 0, 1, 1], [], []>} : vector<128x128xbf16>, vector<128x128xbf16>, vector<128x128xf32> -> vector<128x128xf32>
    %14 = arith.truncf %13 : vector<128x128xf32> to vector<128x128xbf16>
    %cst_12 = arith.constant dense<0.000000e+00> : vector<128x128xf32>
    %15 = tpu.matmul %0, %14, %cst_12 {dimension_numbers = #tpu.dot_dimension_numbers<[1], [0], [0], [1], [0, 0, 1, 1], [], []>} : vector<128x128xbf16>, vector<128x128xbf16>, vector<128x128xf32> -> vector<128x128xf32>
    %c0_13 = arith.constant 0 : index
    %c0_14 = arith.constant 0 : index
    %16 = vector.load %arg6[%c0_13, %c0_14] : memref<1x128xf32, #tpu.memory_space<vmem>>, vector<1x128xf32>
    %17 = vector.broadcast %16 : vector<1x128xf32> to vector<128x128xf32>
    %18 = arith.addf %15, %17 : vector<128x128xf32>
    %cst_15 = arith.constant 0.000000e+00 : f32
    %19 = vector.broadcast %cst_15 : f32 to vector<128x128xf32>
    %20 = arith.maximumf %18, %19 : vector<128x128xf32>
    %21 = arith.truncf %20 : vector<128x128xf32> to vector<128x128xbf16>
    %c0_16 = arith.constant 0 : index
    %c0_17 = arith.constant 0 : index
    %22 = vector.load %arg7[%c0_16, %c0_17] : memref<128x128xbf16, #tpu.memory_space<vmem>>, vector<128x128xbf16>
    %cst_18 = arith.constant dense<0.000000e+00> : vector<128x128xf32>
    %23 = tpu.matmul %21, %22, %cst_18 {dimension_numbers = #tpu.dot_dimension_numbers<[1], [0], [0], [1], [0, 0, 1, 1], [], []>} : vector<128x128xbf16>, vector<128x128xbf16>, vector<128x128xf32> -> vector<128x128xf32>
    %c0_19 = arith.constant 0 : index
    %c0_20 = arith.constant 0 : index
    %24 = vector.load %arg8[%c0_19, %c0_20] : memref<1x128xf32, #tpu.memory_space<vmem>>, vector<1x128xf32>
    %25 = vector.broadcast %24 : vector<1x128xf32> to vector<128x128xf32>
    %26 = arith.addf %23, %25 : vector<128x128xf32>
    %27 = tpu.transpose %26, [1, 0] : vector<128x128xf32> -> vector<128x128xf32>
    %28 = vector.extract_strided_slice %27 {offsets = [0, 0], sizes = [8, 128], strides = [1, 1]} : vector<128x128xf32> to vector<8x128xf32>
    %c0_21 = arith.constant 0 : index
    %c0_22 = arith.constant 0 : index
    %29 = vector.load %arg9[%c0_21, %c0_22] : memref<8x128xf32, #tpu.memory_space<vmem>>, vector<8x128xf32>
    tpu.vector_store %arg9[%c0_21, %c0_22], %28 {strides = array<i32>} : memref<8x128xf32, #tpu.memory_space<vmem>>, vector<8x128xf32>,
    return
  }
}

</mosaic_0001>

<llo_original>
// kernel: mul.5
$region0: #{mul.5}
  #allocation2 [shape = 's32[1]{0}', space=sflag, size = 0x4, scoped, tag = 'scoped memory for mul.5']
  %s0 = inlined_call_operand.vmem [shape: f32[24], index: 0, kind: input, shape index: {}]
  %s1 = inlined_call_operand.vmem [shape: f32[24], index: 1, kind: input, shape index: {}]
  %s2 = inlined_call_operand.hbm [shape: f32[24], index: 2, kind: output, shape index: {}]
  $region1: #{mul.5} parent=0
    #allocation0 [shape = 'u8[512]{0}', space=vmem, size = 0x400, scoped, tag = 'operand span for operand 2']
    #allocation1 [shape = 's32[1]{0}', space=sflag, size = 0x4, scoped, tag = 'scoped memory for mul.5']
    %3 = vsyncpa [#allocation1], 0
    %v4 = vld [vmem:[%s0] sm:$0x1]
    %v5 = vld [vmem:[%s1] sm:$0x1]
    %6 = xla_tuple %v4, %v5
    %7 = xla_tuple %6
    %v8 = vmul.f32 %v4, %v5
    %9 = xla_tuple %v8
    %10 = vst [vmem:[#allocation0] sm:$0x1] %v8
    %12 = vsyncadd [#allocation1], 0
    %s14 = sshll.u32 [#allocation0], 4
    %s15 = int_to_ptr.vmem [resolvable:$true] %s14
    %s16 = sshll.u32 %s2, 4
    %s17 = int_to_ptr.hbm [resolvable:$true] %s16
    %19 = dma.vmem_to_hbm [thread:$0]  %s15, 16, %s17, [#allocation1]
    %21 = dma.done [#allocation1], 16
    %22 = vsyncpa [#allocation1], 1

// kernel: gcn_forward.1
$region0: #{gcn_forward.1}
  #allocation0 [shape = 'u32[]', space=smem, size = 0x4, offset = 0x4, fixed_abs, tag = 'smem constant byte address 0x4 - core index']
  #allocation1 [shape = 'u32[72,128]{1,0:T(1,128)}', space=vmem, size = 0x9000, scoped, tag = 'internal scratch']
  #allocation2 [shape = 's32[1]{0:T(128)S(6)}', space=smem, size = 0x200, scoped, tag = 'scoped memory for gcn_forward.1']
  %s0 = inlined_call_operand.<no memory space> [shape: s32[1], index: 0, kind: input, shape index: {}]
  %s1 = inlined_call_operand.vmem [shape: bf16[128,128], index: 1, kind: input, shape index: {}]
  %s2 = inlined_call_operand.vmem [shape: bf16[128,128], index: 2, kind: input, shape index: {}]
  %s3 = inlined_call_operand.vmem [shape: bf16[128,128], index: 3, kind: input, shape index: {}]
  %s4 = inlined_call_operand.vmem [shape: f32[1,128], index: 4, kind: input, shape index: {}]
  %s5 = inlined_call_operand.vmem [shape: bf16[128,128], index: 5, kind: input, shape index: {}]
  %s6 = inlined_call_operand.vmem [shape: f32[1,128], index: 6, kind: input, shape index: {}]
  %s7 = inlined_call_operand.vmem [shape: bf16[128,128], index: 7, kind: input, shape index: {}]
  %s8 = inlined_call_operand.vmem [shape: f32[1,128], index: 8, kind: input, shape index: {}]
  %s9 = inlined_call_operand.vmem [shape: f32[8,128], index: 9, kind: output, shape index: {}]
  %s10 = sld [smem:[#allocation0]]
  $region46: #{gcn_forward.1} parent=0
    _
  %s12 = ssub.s32 1, %s10
  %s13 = scalar_select 0, %s12, %s10
  %14 = sst [smem:[#allocation2]] %s0
  // Predicated region
  $region2: #{gcn_forward.1} parent=0 // pred_check
    _
  $region3: #{gcn_forward.1} parent=0 // pred_check_branch
    %16 = sbr.rel (0) target = $region5
  $region4: #{gcn_forward.1} parent=0 // pred_region
    _
  $region5: #{gcn_forward.1} parent=0 // pred_fallthru
    _
  // Predicated region
  $region6: #{gcn_forward.1} parent=0 // pred_check
    _
  $region7: #{gcn_forward.1} parent=0 // pred_check_branch
    %18 = sbr.rel (0) target = $region9
  $region8: #{gcn_forward.1} parent=0 // pred_region
    _
  $region9: #{gcn_forward.1} parent=0 // pred_fallthru
    _
  // Predicated region
  $region10: #{gcn_forward.1} parent=0 // pred_check
    _
  $region11: #{gcn_forward.1} parent=0 // pred_check_branch
    %20 = sbr.rel (0) target = $region13
  $region12: #{gcn_forward.1} parent=0 // pred_region
    _
  $region13: #{gcn_forward.1} parent=0 // pred_fallthru
    _
  // Predicated region
  $region14: #{gcn_forward.1} parent=0 // pred_check
    _
  $region15: #{gcn_forward.1} parent=0 // pred_check_branch
    %22 = sbr.rel (0) target = $region17
  $region16: #{gcn_forward.1} parent=0 // pred_region
    _
  $region17: #{gcn_forward.1} parent=0 // pred_fallthru
    _
  // Predicated region
  $region18: #{gcn_forward.1} parent=0 // pred_check
    _
  $region19: #{gcn_forward.1} parent=0 // pred_check_branch
    %24 = sbr.rel (0) target = $region21
  $region20: #{gcn_forward.1} parent=0 // pred_region
    _
  $region21: #{gcn_forward.1} parent=0 // pred_fallthru
    _
  // Predicated region
  $region22: #{gcn_forward.1} parent=0 // pred_check
    _
  $region23: #{gcn_forward.1} parent=0 // pred_check_branch
    %26 = sbr.rel (0) target = $region25
  $region24: #{gcn_forward.1} parent=0 // pred_region
    _
  $region25: #{gcn_forward.1} parent=0 // pred_fallthru
    _
  // Predicated region
  $region26: #{gcn_forward.1} parent=0 // pred_check
    _
  $region27: #{gcn_forward.1} parent=0 // pred_check_branch
    %28 = sbr.rel (0) target = $region29
  $region28: #{gcn_forward.1} parent=0 // pred_region
    _
  $region29: #{gcn_forward.1} parent=0 // pred_fallthru
    _
  // Predicated region
  $region30: #{gcn_forward.1} parent=0 // pred_check
    _
  $region31: #{gcn_forward.1} parent=0 // pred_check_branch
    %30 = sbr.rel (0) target = $region33
  $region32: #{gcn_forward.1} parent=0 // pred_region
    _
  $region33: #{gcn_forward.1} parent=0 // pred_fallthru
    _
  // Predicated region
  $region34: #{gcn_forward.1} parent=0 // pred_check
    _
  $region35: #{gcn_forward.1} parent=0 // pred_check_branch
    %32 = sbr.rel (0) target = $region37
  $region36: #{gcn_forward.1} parent=0 // pred_region
    _
  $region37: #{gcn_forward.1} parent=0 // pred_fallthru
    _
  %v33 = vld [vmem:[%s1] sm:$0xf]
  %v34 = vld [vmem:[%s1 + $0x4] sm:$0xf]
  %v35 = vld [vmem:[%s1 + $0x8] sm:$0xf]
  %v36 = vld [vmem:[%s1 + $0xc] sm:$0xf]
  %v37 = vld [vmem:[%s1 + $0x10] sm:$0xf]
  %v38 = vld [vmem:[%s1 + $0x14] sm:$0xf]
  %v39 = vld [vmem:[%s1 + $0x18] sm:$0xf]
  %v40 = vld [vmem:[%s1 + $0x1c] sm:$0xf]
  %v41 = vld [vmem:[%s1 + $0x20] sm:$0xf]
  %v42 = vld [vmem:[%s1 + $0x24] sm:$0xf]
  %v43 = vld [vmem:[%s1 + $0x28] sm:$0xf]
  %v44 = vld [vmem:[%s1 + $0x2c] sm:$0xf]
  %v45 = vld [vmem:[%s1 + $0x30] sm:$0xf]
  %v46 = vld [vmem:[%s1 + $0x34] sm:$0xf]
  %v47 = vld [vmem:[%s1 + $0x38] sm:$0xf]
  %v48 = vld [vmem:[%s1 + $0x3c] sm:$0xf]
  %v49 = vld [vmem:[%s2] sm:$0xf]
  %v50 = vld [vmem:[%s2 + $0x4] sm:$0xf]
  %v51 = vld [vmem:[%s2 + $0x8] sm:$0xf]
  %v52 = vld [vmem:[%s2 + $0xc] sm:$0xf]
  %v53 = vld [vmem:[%s2 + $0x10] sm:$0xf]
  %v54 = vld [vmem:[%s2 + $0x14] sm:$0xf]
  %v55 = vld [vmem:[%s2 + $0x18] sm:$0xf]
  %v56 = vld [vmem:[%s2 + $0x1c] sm:$0xf]
  %v57 = vld [vmem:[%s2 + $0x20] sm:$0xf]
  %v58 = vld [vmem:[%s2 + $0x24] sm:$0xf]
  %v59 = vld [vmem:[%s2 + $0x28] sm:$0xf]
  %v60 = vld [vmem:[%s2 + $0x2c] sm:$0xf]
  %v61 = vld [vmem:[%s2 + $0x30] sm:$0xf]
  %v62 = vld [vmem:[%s2 + $0x34] sm:$0xf]
  %v63 = vld [vmem:[%s2 + $0x38] sm:$0xf]
  %v64 = vld [vmem:[%s2 + $0x3c] sm:$0xf]
  %v65 = vld [vmem:[%s3] sm:$0xf]
  %v66 = vld [vmem:[%s3 + $0x4] sm:$0xf]
  %v67 = vld [vmem:[%s3 + $0x8] sm:$0xf]
  %v68 = vld [vmem:[%s3 + $0xc] sm:$0xf]
  %v69 = vld [vmem:[%s3 + $0x10] sm:$0xf]
  %v70 = vld [vmem:[%s3 + $0x14] sm:$0xf]
  %v71 = vld [vmem:[%s3 + $0x18] sm:$0xf]
  %v72 = vld [vmem:[%s3 + $0x1c] sm:$0xf]
  %v73 = vld [vmem:[%s3 + $0x20] sm:$0xf]
  %v74 = vld [vmem:[%s3 + $0x24] sm:$0xf]
  %v75 = vld [vmem:[%s3 + $0x28] sm:$0xf]
  %v76 = vld [vmem:[%s3 + $0x2c] sm:$0xf]
  %v77 = vld [vmem:[%s3 + $0x30] sm:$0xf]
  %v78 = vld [vmem:[%s3 + $0x34] sm:$0xf]
  %v79 = vld [vmem:[%s3 + $0x38] sm:$0xf]
  %v80 = vld [vmem:[%s3 + $0x3c] sm:$0xf]
  %v97 = vunpack.c.l.b16 %v49
  %v98 = vunpack.c.l.b16 %v50
  %v99 = vunpack.c.l.b16 %v51
  %v100 = vunpack.c.l.b16 %v52
  %v101 = vunpack.c.l.b16 %v53
  %v102 = vunpack.c.l.b16 %v54
  %v103 = vunpack.c.l.b16 %v55
  %v104 = vunpack.c.l.b16 %v56
  %v105 = vunpack.c.l.b16 %v57
  %v106 = vunpack.c.l.b16 %v58
  %v107 = vunpack.c.l.b16 %v59
  %v108 = vunpack.c.l.b16 %v60
  %v109 = vunpack.c.l.b16 %v61
  %v110 = vunpack.c.l.b16 %v62
  %v111 = vunpack.c.l.b16 %v63
  %v112 = vunpack.c.l.b16 %v64
  %v113 = vpack.c.b16 %v98, %v97
  %v114 = vpack.c.b16 %v100, %v99
  %v115 = vpack.c.b16 %v102, %v101
  %v116 = vpack.c.b16 %v104, %v103
  %v117 = vpack.c.b16 %v106, %v105
  %v118 = vpack.c.b16 %v108, %v107
  %v119 = vpack.c.b16 %v110, %v109
  %v120 = vpack.c.b16 %v112, %v111
  %v145 = vunpack.c.l.b16 %v65
  %v146 = vunpack.c.l.b16 %v66
  %v147 = vunpack.c.l.b16 %v67
  %v148 = vunpack.c.l.b16 %v68
  %v149 = vunpack.c.l.b16 %v69
  %v150 = vunpack.c.l.b16 %v70
  %v151 = vunpack.c.l.b16 %v71
  %v152 = vunpack.c.l.b16 %v72
  %v153 = vunpack.c.l.b16 %v73
  %v154 = vunpack.c.l.b16 %v74
  %v155 = vunpack.c.l.b16 %v75
  %v156 = vunpack.c.l.b16 %v76
  %v157 = vunpack.c.l.b16 %v77
  %v158 = vunpack.c.l.b16 %v78
  %v159 = vunpack.c.l.b16 %v79
  %v160 = vunpack.c.l.b16 %v80
  %v161 = vpack.c.b16 %v146, %v145
  %v162 = vpack.c.b16 %v148, %v147
  %v163 = vpack.c.b16 %v150, %v149
  %v164 = vpack.c.b16 %v152, %v151
  %v165 = vpack.c.b16 %v154, %v153
  %v166 = vpack.c.b16 %v156, %v155
  %v167 = vpack.c.b16 %v158, %v157
  %v168 = vpack.c.b16 %v160, %v159
  %177 = vmatpush.bf16.msra.mxu0 %v168
  %178 = vmatpush.bf16.msra.mxu0 %v167
  %179 = vmatpush.bf16.msra.mxu0 %v166
  %180 = vmatpush.bf16.msra.mxu0 %v165
  %181 = vmatpush.bf16.msra.mxu0 %v164
  %182 = vmatpush.bf16.msra.mxu0 %v163
  %183 = vmatpush.bf16.msra.mxu0 %v162
  %184 = vmatpush.bf16.msra.mxu0 %v161
  %185 = vmatmul.bf16.gmra.mxu0 %v113
  %v186 = vpop.f32.mrf.mxu0
  %v187 = vadd.f32 0.0, %v186
  %v188 = vpop.f32.mrf.mxu0
  %v189 = vadd.f32 0.0, %v188
  %190 = vmatmul.bf16.gmra.mxu0 %v114
  %v191 = vpop.f32.mrf.mxu0
  %v192 = vadd.f32 0.0, %v191
  %v193 = vpop.f32.mrf.mxu0
  %v194 = vadd.f32 0.0, %v193
  %195 = vmatmul.bf16.gmra.mxu0 %v115
  %v196 = vpop.f32.mrf.mxu0
  %v197 = vadd.f32 0.0, %v196
  %v198 = vpop.f32.mrf.mxu0
  %v199 = vadd.f32 0.0, %v198
  %200 = vmatmul.bf16.gmra.mxu0 %v116
  %v201 = vpop.f32.mrf.mxu0
  %v202 = vadd.f32 0.0, %v201
  %v203 = vpop.f32.mrf.mxu0
  %v204 = vadd.f32 0.0, %v203
  %205 = vmatmul.bf16.gmra.mxu0 %v117
  %v206 = vpop.f32.mrf.mxu0
  %v207 = vadd.f32 0.0, %v206
  %v208 = vpop.f32.mrf.mxu0
  %v209 = vadd.f32 0.0, %v208
  %210 = vmatmul.bf16.gmra.mxu0 %v118
  %v211 = vpop.f32.mrf.mxu0
  %v212 = vadd.f32 0.0, %v211
  %v213 = vpop.f32.mrf.mxu0
  %v214 = vadd.f32 0.0, %v213
  %215 = vmatmul.bf16.gmra.mxu0 %v119
  %v216 = vpop.f32.mrf.mxu0
  %v217 = vadd.f32 0.0, %v216
  %v218 = vpop.f32.mrf.mxu0
  %v219 = vadd.f32 0.0, %v218
  %220 = vmatmul.bf16.gmra.mxu0 %v120
  %v221 = vpop.f32.mrf.mxu0
  %v222 = vadd.f32 0.0, %v221
  %v223 = vpop.f32.mrf.mxu0
  %v224 = vadd.f32 0.0, %v223
  %225 = vdwg.mxu0
  %v226 = vpack.c.bf16 %v189, %v187
  %v227 = vpack.c.bf16 %v194, %v192
  %v228 = vpack.c.bf16 %v199, %v197
  %v229 = vpack.c.bf16 %v204, %v202
  %v230 = vpack.c.bf16 %v209, %v207
  %v231 = vpack.c.bf16 %v214, %v212
  %v232 = vpack.c.bf16 %v219, %v217
  %v233 = vpack.c.bf16 %v224, %v222
  %v234 = vld [vmem:[%s4] sm:$0x1]
  %v236 = vperm.slane %v234, 0
  %v254 = vunpack.c.l.b16 %v33
  %v255 = vunpack.c.l.b16 %v34
  %v256 = vunpack.c.l.b16 %v35
  %v257 = vunpack.c.l.b16 %v36
  %v258 = vunpack.c.l.b16 %v37
  %v259 = vunpack.c.l.b16 %v38
  %v260 = vunpack.c.l.b16 %v39
  %v261 = vunpack.c.l.b16 %v40
  %v262 = vunpack.c.l.b16 %v41
  %v263 = vunpack.c.l.b16 %v42
  %v264 = vunpack.c.l.b16 %v43
  %v265 = vunpack.c.l.b16 %v44
  %v266 = vunpack.c.l.b16 %v45
  %v267 = vunpack.c.l.b16 %v46
  %v268 = vunpack.c.l.b16 %v47
  %v269 = vunpack.c.l.b16 %v48
  %v270 = vpack.c.b16 %v255, %v254
  %v271 = vpack.c.b16 %v257, %v256
  %v272 = vpack.c.b16 %v259, %v258
  %v273 = vpack.c.b16 %v261, %v260
  %v274 = vpack.c.b16 %v263, %v262
  %v275 = vpack.c.b16 %v265, %v264
  %v276 = vpack.c.b16 %v267, %v266
  %v277 = vpack.c.b16 %v269, %v268
  %286 = vmatpush.bf16.msra.mxu0 %v233
  %287 = vmatpush.bf16.msra.mxu0 %v232
  %288 = vmatpush.bf16.msra.mxu0 %v231
  %289 = vmatpush.bf16.msra.mxu0 %v230
  %290 = vmatpush.bf16.msra.mxu0 %v229
  %291 = vmatpush.bf16.msra.mxu0 %v228
  %292 = vmatpush.bf16.msra.mxu0 %v227
  %293 = vmatpush.bf16.msra.mxu0 %v226
  %294 = vmatmul.bf16.gmra.mxu0 %v270
  %v295 = vpop.f32.mrf.mxu0
  %v296 = vadd.f32 %v236, %v295
  %v297 = vpop.f32.mrf.mxu0
  %v298 = vadd.f32 %v236, %v297
  %299 = vmatmul.bf16.gmra.mxu0 %v271
  %v300 = vpop.f32.mrf.mxu0
  %v301 = vadd.f32 %v236, %v300
  %v302 = vpop.f32.mrf.mxu0
  %v303 = vadd.f32 %v236, %v302
  %304 = vmatmul.bf16.gmra.mxu0 %v272
  %v305 = vpop.f32.mrf.mxu0
  %v306 = vadd.f32 %v236, %v305
  %v307 = vpop.f32.mrf.mxu0
  %v308 = vadd.f32 %v236, %v307
  %309 = vmatmul.bf16.gmra.mxu0 %v273
  %v310 = vpop.f32.mrf.mxu0
  %v311 = vadd.f32 %v236, %v310
  %v312 = vpop.f32.mrf.mxu0
  %v313 = vadd.f32 %v236, %v312
  %314 = vmatmul.bf16.gmra.mxu0 %v274
  %v315 = vpop.f32.mrf.mxu0
  %v316 = vadd.f32 %v236, %v315
  %v317 = vpop.f32.mrf.mxu0
  %v318 = vadd.f32 %v236, %v317
  %319 = vmatmul.bf16.gmra.mxu0 %v275
  %v320 = vpop.f32.mrf.mxu0
  %v321 = vadd.f32 %v236, %v320
  %v322 = vpop.f32.mrf.mxu0
  %v323 = vadd.f32 %v236, %v322
  %324 = vmatmul.bf16.gmra.mxu0 %v276
  %v325 = vpop.f32.mrf.mxu0
  %v326 = vadd.f32 %v236, %v325
  %v327 = vpop.f32.mrf.mxu0
  %v328 = vadd.f32 %v236, %v327
  %329 = vmatmul.bf16.gmra.mxu0 %v277
  %v330 = vpop.f32.mrf.mxu0
  %v331 = vadd.f32 %v236, %v330
  %v332 = vpop.f32.mrf.mxu0
  %v333 = vadd.f32 %v236, %v332
  %334 = vdwg.mxu0
  %v335 = vmax.f32 %v296, 0.0
  %v336 = vmax.f32 %v298, 0.0
  %v337 = vmax.f32 %v301, 0.0
  %v338 = vmax.f32 %v303, 0.0
  %v339 = vmax.f32 %v306, 0.0
  %v340 = vmax.f32 %v308, 0.0
  %v341 = vmax.f32 %v311, 0.0
  %v342 = vmax.f32 %v313, 0.0
  %v343 = vmax.f32 %v316, 0.0
  %v344 = vmax.f32 %v318, 0.0
  %v345 = vmax.f32 %v321, 0.0
  %v346 = vmax.f32 %v323, 0.0
  %v347 = vmax.f32 %v326, 0.0
  %v348 = vmax.f32 %v328, 0.0
  %v349 = vmax.f32 %v331, 0.0
  %v350 = vmax.f32 %v333, 0.0
  %v351 = vpack.c.bf16 %v336, %v335
  %v352 = vpack.c.bf16 %v338, %v337
  %v353 = vpack.c.bf16 %v340, %v339
  %v354 = vpack.c.bf16 %v342, %v341
  %v355 = vpack.c.bf16 %v344, %v343
  %v356 = vpack.c.bf16 %v346, %v345
  %v357 = vpack.c.bf16 %v348, %v347
  %v358 = vpack.c.bf16 %v350, %v349
  %v359 = vld [vmem:[%s5] sm:$0xf]
  %v360 = vld [vmem:[%s5 + $0x4] sm:$0xf]
  %v361 = vld [vmem:[%s5 + $0x8] sm:$0xf]
  %v362 = vld [vmem:[%s5 + $0xc] sm:$0xf]
  %v363 = vld [vmem:[%s5 + $0x10] sm:$0xf]
  %v364 = vld [vmem:[%s5 + $0x14] sm:$0xf]
  %v365 = vld [vmem:[%s5 + $0x18] sm:$0xf]
  %v366 = vld [vmem:[%s5 + $0x1c] sm:$0xf]
  %v367 = vld [vmem:[%s5 + $0x20] sm:$0xf]
  %v368 = vld [vmem:[%s5 + $0x24] sm:$0xf]
  %v369 = vld [vmem:[%s5 + $0x28] sm:$0xf]
  %v370 = vld [vmem:[%s5 + $0x2c] sm:$0xf]
  %v371 = vld [vmem:[%s5 + $0x30] sm:$0xf]
  %v372 = vld [vmem:[%s5 + $0x34] sm:$0xf]
  %v373 = vld [vmem:[%s5 + $0x38] sm:$0xf]
  %v374 = vld [vmem:[%s5 + $0x3c] sm:$0xf]
  %v391 = vunpack.c.l.b16 %v359
  %v392 = vunpack.c.l.b16 %v360
  %v393 = vunpack.c.l.b16 %v361
  %v394 = vunpack.c.l.b16 %v362
  %v395 = vunpack.c.l.b16 %v363
  %v396 = vunpack.c.l.b16 %v364
  %v397 = vunpack.c.l.b16 %v365
  %v398 = vunpack.c.l.b16 %v366
  %v399 = vunpack.c.l.b16 %v367
  %v400 = vunpack.c.l.b16 %v368
  %v401 = vunpack.c.l.b16 %v369
  %v402 = vunpack.c.l.b16 %v370
  %v403 = vunpack.c.l.b16 %v371
  %v404 = vunpack.c.l.b16 %v372
  %v405 = vunpack.c.l.b16 %v373
  %v406 = vunpack.c.l.b16 %v374
  %v407 = vpack.c.b16 %v392, %v391
  %v408 = vpack.c.b16 %v394, %v393
  %v409 = vpack.c.b16 %v396, %v395
  %v410 = vpack.c.b16 %v398, %v397
  %v411 = vpack.c.b16 %v400, %v399
  %v412 = vpack.c.b16 %v402, %v401
  %v413 = vpack.c.b16 %v404, %v403
  %v414 = vpack.c.b16 %v406, %v405
  %423 = vmatpush.bf16.msra.mxu0 %v414
  %424 = vmatpush.bf16.msra.mxu0 %v413
  %425 = vmatpush.bf16.msra.mxu0 %v412
  %426 = vmatpush.bf16.msra.mxu0 %v411
  %427 = vmatpush.bf16.msra.mxu0 %v410
  %428 = vmatpush.bf16.msra.mxu0 %v409
  %429 = vmatpush.bf16.msra.mxu0 %v408
  %430 = vmatpush.bf16.msra.mxu0 %v407
  %431 = vmatmul.bf16.gmra.mxu0 %v351
  %v432 = vpop.f32.mrf.mxu0
  %v433 = vadd.f32 0.0, %v432
  %v434 = vpop.f32.mrf.mxu0
  %v435 = vadd.f32 0.0, %v434
  %436 = vmatmul.bf16.gmra.mxu0 %v352
  %v437 = vpop.f32.mrf.mxu0
  %v438 = vadd.f32 0.0, %v437
  %v439 = vpop.f32.mrf.mxu0
  %v440 = vadd.f32 0.0, %v439
  %441 = vmatmul.bf16.gmra.mxu0 %v353
  %v442 = vpop.f32.mrf.mxu0
  %v443 = vadd.f32 0.0, %v442
  %v444 = vpop.f32.mrf.mxu0
  %v445 = vadd.f32 0.0, %v444
  %446 = vmatmul.bf16.gmra.mxu0 %v354
  %v447 = vpop.f32.mrf.mxu0
  %v448 = vadd.f32 0.0, %v447
  %v449 = vpop.f32.mrf.mxu0
  %v450 = vadd.f32 0.0, %v449
  %451 = vmatmul.bf16.gmra.mxu0 %v355
  %v452 = vpop.f32.mrf.mxu0
  %v453 = vadd.f32 0.0, %v452
  %v454 = vpop.f32.mrf.mxu0
  %v455 = vadd.f32 0.0, %v454
  %456 = vmatmul.bf16.gmra.mxu0 %v356
  %v457 = vpop.f32.mrf.mxu0
  %v458 = vadd.f32 0.0, %v457
  %v459 = vpop.f32.mrf.mxu0
  %v460 = vadd.f32 0.0, %v459
  %461 = vmatmul.bf16.gmra.mxu0 %v357
  %v462 = vpop.f32.mrf.mxu0
  %v463 = vadd.f32 0.0, %v462
  %v464 = vpop.f32.mrf.mxu0
  %v465 = vadd.f32 0.0, %v464
  %466 = vmatmul.bf16.gmra.mxu0 %v358
  %v467 = vpop.f32.mrf.mxu0
  %v468 = vadd.f32 0.0, %v467
  %v469 = vpop.f32.mrf.mxu0
  %v470 = vadd.f32 0.0, %v469
  %471 = vdwg.mxu0
  %v472 = vpack.c.bf16 %v435, %v433
  %v473 = vpack.c.bf16 %v440, %v438
  %v474 = vpack.c.bf16 %v445, %v443
  %v475 = vpack.c.bf16 %v450, %v448
  %v476 = vpack.c.bf16 %v455, %v453
  %v477 = vpack.c.bf16 %v460, %v458
  %v478 = vpack.c.bf16 %v465, %v463
  %v479 = vpack.c.bf16 %v470, %v468
  %v480 = vld [vmem:[%s6] sm:$0x1]
  %v482 = vperm.slane %v480, 0
  %484 = vmatpush.bf16.msra.mxu0 %v479
  %485 = vmatpush.bf16.msra.mxu0 %v478
  %486 = vmatpush.bf16.msra.mxu0 %v477
  %487 = vmatpush.bf16.msra.mxu0 %v476
  %488 = vmatpush.bf16.msra.mxu0 %v475
  %489 = vmatpush.bf16.msra.mxu0 %v474
  %490 = vmatpush.bf16.msra.mxu0 %v473
  %491 = vmatpush.bf16.msra.mxu0 %v472
  %492 = vmatmul.bf16.gmra.mxu0 %v270
  %v493 = vpop.f32.mrf.mxu0
  %v494 = vadd.f32 %v482, %v493
  %v495 = vpop.f32.mrf.mxu0
  %v496 = vadd.f32 %v482, %v495
  %497 = vmatmul.bf16.gmra.mxu0 %v271
  %v498 = vpop.f32.mrf.mxu0
  %v499 = vadd.f32 %v482, %v498
  %v500 = vpop.f32.mrf.mxu0
  %v501 = vadd.f32 %v482, %v500
  %502 = vmatmul.bf16.gmra.mxu0 %v272
  %v503 = vpop.f32.mrf.mxu0
  %v504 = vadd.f32 %v482, %v503
  %v505 = vpop.f32.mrf.mxu0
  %v506 = vadd.f32 %v482, %v505
  %507 = vmatmul.bf16.gmra.mxu0 %v273
  %v508 = vpop.f32.mrf.mxu0
  %v509 = vadd.f32 %v482, %v508
  %v510 = vpop.f32.mrf.mxu0
  %v511 = vadd.f32 %v482, %v510
  %512 = vmatmul.bf16.gmra.mxu0 %v274
  %v513 = vpop.f32.mrf.mxu0
  %v514 = vadd.f32 %v482, %v513
  %v515 = vpop.f32.mrf.mxu0
  %v516 = vadd.f32 %v482, %v515
  %517 = vmatmul.bf16.gmra.mxu0 %v275
  %v518 = vpop.f32.mrf.mxu0
  %v519 = vadd.f32 %v482, %v518
  %v520 = vpop.f32.mrf.mxu0
  %v521 = vadd.f32 %v482, %v520
  %522 = vmatmul.bf16.gmra.mxu0 %v276
  %v523 = vpop.f32.mrf.mxu0
  %v524 = vadd.f32 %v482, %v523
  %v525 = vpop.f32.mrf.mxu0
  %v526 = vadd.f32 %v482, %v525
  %527 = vmatmul.bf16.gmra.mxu0 %v277
  %v528 = vpop.f32.mrf.mxu0
  %v529 = vadd.f32 %v482, %v528
  %v530 = vpop.f32.mrf.mxu0
  %v531 = vadd.f32 %v482, %v530
  %532 = vdwg.mxu0
  %v533 = vmax.f32 %v494, 0.0
  %v534 = vmax.f32 %v496, 0.0
  %v535 = vmax.f32 %v499, 0.0
  %v536 = vmax.f32 %v501, 0.0
  %v537 = vmax.f32 %v504, 0.0
  %v538 = vmax.f32 %v506, 0.0
  %v539 = vmax.f32 %v509, 0.0
  %v540 = vmax.f32 %v511, 0.0
  %v541 = vmax.f32 %v514, 0.0
  %v542 = vmax.f32 %v516, 0.0
  %v543 = vmax.f32 %v519, 0.0
  %v544 = vmax.f32 %v521, 0.0
  %v545 = vmax.f32 %v524, 0.0
  %v546 = vmax.f32 %v526, 0.0
  %v547 = vmax.f32 %v529, 0.0
  %v548 = vmax.f32 %v531, 0.0
  %v549 = vpack.c.bf16 %v534, %v533
  %v550 = vpack.c.bf16 %v536, %v535
  %v551 = vpack.c.bf16 %v538, %v537
  %v552 = vpack.c.bf16 %v540, %v539
  %v553 = vpack.c.bf16 %v542, %v541
  %v554 = vpack.c.bf16 %v544, %v543
  %v555 = vpack.c.bf16 %v546, %v545
  %v556 = vpack.c.bf16 %v548, %v547
  %v557 = vld [vmem:[%s7] sm:$0xf]
  %v558 = vld [vmem:[%s7 + $0x4] sm:$0xf]
  %v559 = vld [vmem:[%s7 + $0x8] sm:$0xf]
  %v560 = vld [vmem:[%s7 + $0xc] sm:$0xf]
  %v561 = vld [vmem:[%s7 + $0x10] sm:$0xf]
  %v562 = vld [vmem:[%s7 + $0x14] sm:$0xf]
  %v563 = vld [vmem:[%s7 + $0x18] sm:$0xf]
  %v564 = vld [vmem:[%s7 + $0x1c] sm:$0xf]
  %v565 = vld [vmem:[%s7 + $0x20] sm:$0xf]
  %v566 = vld [vmem:[%s7 + $0x24] sm:$0xf]
  %v567 = vld [vmem:[%s7 + $0x28] sm:$0xf]
  %v568 = vld [vmem:[%s7 + $0x2c] sm:$0xf]
  %v569 = vld [vmem:[%s7 + $0x30] sm:$0xf]
  %v570 = vld [vmem:[%s7 + $0x34] sm:$0xf]
  %v571 = vld [vmem:[%s7 + $0x38] sm:$0xf]
  %v572 = vld [vmem:[%s7 + $0x3c] sm:$0xf]
  %v573 = vld [vmem:[%s8] sm:$0x1]
  %v575 = vperm.slane %v573, 0
  %v593 = vunpack.c.l.b16 %v557
  %v594 = vunpack.c.l.b16 %v558
  %v595 = vunpack.c.l.b16 %v559
  %v596 = vunpack.c.l.b16 %v560
  %v597 = vunpack.c.l.b16 %v561
  %v598 = vunpack.c.l.b16 %v562
  %v599 = vunpack.c.l.b16 %v563
  %v600 = vunpack.c.l.b16 %v564
  %v601 = vunpack.c.l.b16 %v565
  %v602 = vunpack.c.l.b16 %v566
  %v603 = vunpack.c.l.b16 %v567
  %v604 = vunpack.c.l.b16 %v568
  %v605 = vunpack.c.l.b16 %v569
  %v606 = vunpack.c.l.b16 %v570
  %v607 = vunpack.c.l.b16 %v571
  %v608 = vunpack.c.l.b16 %v572
  %v609 = vpack.c.b16 %v594, %v593
  %v610 = vpack.c.b16 %v596, %v595
  %v611 = vpack.c.b16 %v598, %v597
  %v612 = vpack.c.b16 %v600, %v599
  %v613 = vpack.c.b16 %v602, %v601
  %v614 = vpack.c.b16 %v604, %v603
  %v615 = vpack.c.b16 %v606, %v605
  %v616 = vpack.c.b16 %v608, %v607
  %625 = vmatpush.bf16.msra.mxu0 %v616
  %626 = vmatpush.bf16.msra.mxu0 %v615
  %627 = vmatpush.bf16.msra.mxu0 %v614
  %628 = vmatpush.bf16.msra.mxu0 %v613
  %629 = vmatpush.bf16.msra.mxu0 %v612
  %630 = vmatpush.bf16.msra.mxu0 %v611
  %631 = vmatpush.bf16.msra.mxu0 %v610
  %632 = vmatpush.bf16.msra.mxu0 %v609
  %633 = vmatmul.bf16.gmra.mxu0 %v549
  %v634 = vpop.f32.mrf.mxu0
  %v635 = vadd.f32 %v575, %v634
  %v636 = vpop.f32.mrf.mxu0
  %v637 = vadd.f32 %v575, %v636
  %638 = vmatmul.bf16.gmra.mxu0 %v550
  %v639 = vpop.f32.mrf.mxu0
  %v640 = vadd.f32 %v575, %v639
  %v641 = vpop.f32.mrf.mxu0
  %v642 = vadd.f32 %v575, %v641
  %643 = vmatmul.bf16.gmra.mxu0 %v551
  %v644 = vpop.f32.mrf.mxu0
  %v645 = vadd.f32 %v575, %v644
  %v646 = vpop.f32.mrf.mxu0
  %v647 = vadd.f32 %v575, %v646
  %648 = vmatmul.bf16.gmra.mxu0 %v552
  %v649 = vpop.f32.mrf.mxu0
  %v650 = vadd.f32 %v575, %v649
  %v651 = vpop.f32.mrf.mxu0
  %v652 = vadd.f32 %v575, %v651
  %653 = vmatmul.bf16.gmra.mxu0 %v553
  %v654 = vpop.f32.mrf.mxu0
  %v655 = vadd.f32 %v575, %v654
  %v656 = vpop.f32.mrf.mxu0
  %v657 = vadd.f32 %v575, %v656
  %658 = vmatmul.bf16.gmra.mxu0 %v554
  %v659 = vpop.f32.mrf.mxu0
  %v660 = vadd.f32 %v575, %v659
  %v661 = vpop.f32.mrf.mxu0
  %v662 = vadd.f32 %v575, %v661
  %663 = vmatmul.bf16.gmra.mxu0 %v555
  %v664 = vpop.f32.mrf.mxu0
  %v665 = vadd.f32 %v575, %v664
  %v666 = vpop.f32.mrf.mxu0
  %v667 = vadd.f32 %v575, %v666
  %668 = vmatmul.bf16.gmra.mxu0 %v556
  %v669 = vpop.f32.mrf.mxu0
  %v670 = vadd.f32 %v575, %v669
  %v671 = vpop.f32.mrf.mxu0
  %v672 = vadd.f32 %v575, %v671
  %673 = vdwg.mxu0
  %674 = vxpose.xlu0.b32.start [1/16] %v635, 128
  %675 = vxpose.xlu0.b32.cont [2/16] %v637, 128
  %676 = vxpose.xlu0.b32.cont [3/16] %v640, 128
  %677 = vxpose.xlu0.b32.cont [4/16] %v642, 128
  %678 = vxpose.xlu0.b32.cont [5/16] %v645, 128
  %679 = vxpose.xlu0.b32.cont [6/16] %v647, 128
  %680 = vxpose.xlu0.b32.cont [7/16] %v650, 128
  %681 = vxpose.xlu0.b32.cont [8/16] %v652, 128
  %682 = vxpose.xlu0.b32.cont [9/16] %v655, 128
  %683 = vxpose.xlu0.b32.cont [10/16] %v657, 128
  %684 = vxpose.xlu0.b32.cont [11/16] %v660, 128
  %685 = vxpose.xlu0.b32.cont [12/16] %v662, 128
  %686 = vxpose.xlu0.b32.cont [13/16] %v665, 128
  %687 = vxpose.xlu0.b32.cont [14/16] %v667, 128
  %688 = vxpose.xlu0.b32.cont [15/16] %v670, 128
  %689 = vxpose.xlu0.b32.end [16/16] %v672, 128
  %v690 = vpop.trf.xlu0
  %v691 = vpop.trf.xlu0
  %v692 = vpop.trf.xlu0
  %v693 = vpop.trf.xlu0
  %v694 = vpop.trf.xlu0
  %v695 = vpop.trf.xlu0
  %v696 = vpop.trf.xlu0
  %v697 = vpop.trf.xlu0
  %v698 = vpop.trf.xlu0
  %v699 = vpop.trf.xlu0
  %v700 = vpop.trf.xlu0
  %v701 = vpop.trf.xlu0
  %v702 = vpop.trf.xlu0
  %v703 = vpop.trf.xlu0
  %v704 = vpop.trf.xlu0
  %v705 = vpop.trf.xlu0
  %706 = vst [vmem:[%s9] sm:$0xff] %v690
  // Predicated region
  $region38: #{gcn_forward.1} parent=0 // pred_check
    _
  $region39: #{gcn_forward.1} parent=0 // pred_check_branch
    %708 = sbr.rel (0) target = $region41
  $region40: #{gcn_forward.1} parent=0 // pred_region
    _
  $region41: #{gcn_forward.1} parent=0 // pred_fallthru
    _
  // Predicated region
  $region42: #{gcn_forward.1} parent=0 // pred_check
    _
  $region43: #{gcn_forward.1} parent=0 // pred_check_branch
    %710 = sbr.rel (0) target = $region45
  $region44: #{gcn_forward.1} parent=0 // pred_region
    _
  $region45: #{gcn_forward.1} parent=0 // pred_fallthru
    _

</llo_original>
